<compile_context>
chip_gen: v5e
topology: v5e:2x2
jax: 0.10.0
libtpu: 0.0.40
codegen_flags: <defaults>
</compile_context>

<pallas_src>
import numpy as np
import jax
import jax.numpy as jnp
from jax.experimental import pallas as pl
from jax.experimental.pallas import tpu as pltpu

_LANES = 128
_MAX_BLOCK_ROWS = 1024       # 1024*128*4 B = 512 KiB per plane block (x5 arrays, x2 buffers)


def _stacked_maxnet_kernel(tl_ref, tr_ref, bl_ref, br_ref, o_ref):
    """Evaluate the stacked max-networks for one (block_rows, 128) tile.

    Per output element (pure VPU, no MXU, no weights):
      pair net 0 : g1  = ReLU(tl - tr) + ReLU(tr)
      pair net 1 : g2  = ReLU(bl - br) + ReLU(br)
      top net    : out = ReLU(g1 - g2) + g2
    The module's layer4 ReLUs are no-ops (both summands already >= 0) and are
    dropped here (bit-identical result, fewer VPU max ops).
    """
    tl = tl_ref[...]
    tr = tr_ref[...]
    bl = bl_ref[...]
    br = br_ref[...]
    g1 = jnp.maximum(tl - tr, 0.0) + jnp.maximum(tr, 0.0)
    g2 = jnp.maximum(bl - br, 0.0) + jnp.maximum(br, 0.0)
    out = jnp.maximum(g1 - g2, 0.0) + g2
    o_ref[...] = out.astype(o_ref.dtype)


def _to_plane(a, n_out, rows_pad):
    """Flatten, zero-pad to rows_pad*128 elements, reshape lane-dense."""
    flat = a.reshape(-1)
    flat = jnp.pad(flat, (0, rows_pad * _LANES - n_out))
    return flat.reshape(rows_pad, _LANES)


def my_max_pool(x, input_shape, output_shape, kernel_size, stride):
    assert kernel_size == 2, "pairwise tree specialized for kernel_size=2"
    C, H, W = input_shape
    Co, Ho, Wo = output_shape
    # Module quirk: it uses output_shape[1] for both the row and the column
    # decomposition of the flat output index; only consistent when Ho == Wo.
    assert Ho == Wo, "module layout only self-consistent for square outputs"
    n_out = Co * Ho * Wo

    xr = x.reshape(C, H, W).astype(jnp.float32)

    # Window-plane extraction via strided basic slices (lax.slice, no gather):
    # exactly what the sparse layer1 FC weight encodes.
    def plane(dr, dc):
        return xr[:, dr:dr + (Ho - 1) * stride + 1:stride,
                     dc:dc + (Wo - 1) * stride + 1:stride]

    tl, tr, bl, br = plane(0, 0), plane(0, 1), plane(1, 0), plane(1, 1)

    rows = (n_out + _LANES - 1) // _LANES
    if rows <= _MAX_BLOCK_ROWS:
        block_rows = max(8, ((rows + 7) // 8) * 8)   # single step, (8,128)-aligned
        rows_pad = block_rows
    else:
        block_rows = _MAX_BLOCK_ROWS
        rows_pad = ((rows + block_rows - 1) // block_rows) * block_rows
    grid = (rows_pad // block_rows,)

    planes = [_to_plane(p, n_out, rows_pad) for p in (tl, tr, bl, br)]

    spec = pl.BlockSpec((block_rows, _LANES), lambda i: (i, 0))
    out = pl.pallas_call(
        _stacked_maxnet_kernel,
        out_shape=jax.ShapeDtypeStruct((rows_pad, _LANES), jnp.float32),
        grid_spec=pltpu.PrefetchScalarGridSpec(
            num_scalar_prefetch=0,
            grid=grid,
            in_specs=[spec] * 4,
            out_specs=spec,
        ),
        compiler_params=pltpu.CompilerParams(
            dimension_semantics=("parallel",),
            vmem_limit_bytes=32 * 1024 * 1024,
        ),
    )(*planes)
    return out.reshape(-1)[:n_out].reshape(output_shape)


def reference_forward(x, input_shape, output_shape, stride):
    """Pure-numpy replica of the stacked max-network forward semantics."""
    C, H, W = input_shape
    Co, Ho, Wo = output_shape
    xr = np.asarray(x, dtype=np.float64).reshape(C, H, W)
    r0 = np.arange(Ho) * stride
    c0 = np.arange(Wo) * stride
    tl = xr[:, r0[:, None], c0[None, :]]
    tr = xr[:, r0[:, None], c0[None, :] + 1]
    bl = xr[:, r0[:, None] + 1, c0[None, :]]
    br = xr[:, r0[:, None] + 1, c0[None, :] + 1]
    relu = lambda v: np.maximum(v, 0.0)
    g1 = relu(relu(tl - tr) + relu(tr))
    g2 = relu(relu(bl - br) + relu(br))
    return relu(relu(g1 - g2) + relu(g2))


if __name__ == "__main__":
    # Small shapes consistent with the module: maxpool(kernel=2, stride=2)
    # over a (4, 16, 16) input -> (4, 8, 8) output.
    input_shape = (4, 16, 16)
    output_shape = (4, 8, 8)
    kernel_size, stride = 2, 2

    key = jax.random.PRNGKey(0)
    x = jax.random.normal(key, input_shape, dtype=jnp.float32)

    out = my_max_pool(x, input_shape, output_shape, kernel_size, stride)
    out = jax.block_until_ready(out)

    ref = reference_forward(np.asarray(x), input_shape, output_shape, stride)
    np.testing.assert_allclose(np.asarray(out), ref.astype(np.float32),
                               rtol=1e-5, atol=1e-5)
    print("KERNEL_OK")
</pallas_src>

<mosaic_0001>
module attributes {stable_mosaic.version = 11 : i64} {
  func.func @_stacked_maxnet_kernel(%arg0: i32, %arg1: memref<8x128xf32, #tpu.memory_space<vmem>>, %arg2: memref<8x128xf32, #tpu.memory_space<vmem>>, %arg3: memref<8x128xf32, #tpu.memory_space<vmem>>, %arg4: memref<8x128xf32, #tpu.memory_space<vmem>>, %arg5: memref<8x128xf32, #tpu.memory_space<vmem>>) attributes {dimension_semantics = [#tpu.dimension_semantics<parallel>], iteration_bounds = array<i64: 1>, scalar_prefetch = 0 : i64, scratch_operands = 0 : i64, tpu.core_type = #tpu.core_type<tc>, window_params = [{transform_indices = @transform_0, window_bounds = array<i64: 8, 128>}, {transform_indices = @transform_1, window_bounds = array<i64: 8, 128>}, {transform_indices = @transform_2, window_bounds = array<i64: 8, 128>}, {transform_indices = @transform_3, window_bounds = array<i64: 8, 128>}, {transform_indices = @transform_4, window_bounds = array<i64: 8, 128>}]} {
    %c0 = arith.constant 0 : index
    %c0_0 = arith.constant 0 : index
    %0 = vector.load %arg1[%c0, %c0_0] : memref<8x128xf32, #tpu.memory_space<vmem>>, vector<8x128xf32>
    %c0_1 = arith.constant 0 : index
    %c0_2 = arith.constant 0 : index
    %1 = vector.load %arg2[%c0_1, %c0_2] : memref<8x128xf32, #tpu.memory_space<vmem>>, vector<8x128xf32>
    %c0_3 = arith.constant 0 : index
    %c0_4 = arith.constant 0 : index
    %2 = vector.load %arg3[%c0_3, %c0_4] : memref<8x128xf32, #tpu.memory_space<vmem>>, vector<8x128xf32>
    %c0_5 = arith.constant 0 : index
    %c0_6 = arith.constant 0 : index
    %3 = vector.load %arg4[%c0_5, %c0_6] : memref<8x128xf32, #tpu.memory_space<vmem>>, vector<8x128xf32>
    %4 = arith.subf %0, %1 : vector<8x128xf32>
    %cst = arith.constant 0.000000e+00 : f32
    %5 = vector.broadcast %cst : f32 to vector<8x128xf32>
    %6 = arith.maximumf %4, %5 : vector<8x128xf32>
    %cst_7 = arith.constant 0.000000e+00 : f32
    %7 = vector.broadcast %cst_7 : f32 to vector<8x128xf32>
    %8 = arith.maximumf %1, %7 : vector<8x128xf32>
    %9 = arith.addf %6, %8 : vector<8x128xf32>
    %10 = arith.subf %2, %3 : vector<8x128xf32>
    %cst_8 = arith.constant 0.000000e+00 : f32
    %11 = vector.broadcast %cst_8 : f32 to vector<8x128xf32>
    %12 = arith.maximumf %10, %11 : vector<8x128xf32>
    %cst_9 = arith.constant 0.000000e+00 : f32
    %13 = vector.broadcast %cst_9 : f32 to vector<8x128xf32>
    %14 = arith.maximumf %3, %13 : vector<8x128xf32>
    %15 = arith.addf %12, %14 : vector<8x128xf32>
    %16 = arith.subf %9, %15 : vector<8x128xf32>
    %cst_10 = arith.constant 0.000000e+00 : f32
    %17 = vector.broadcast %cst_10 : f32 to vector<8x128xf32>
    %18 = arith.maximumf %16, %17 : vector<8x128xf32>
    %19 = arith.addf %18, %15 : vector<8x128xf32>
    %c0_11 = arith.constant 0 : index
    %c0_12 = arith.constant 0 : index
    %20 = vector.load %arg5[%c0_11, %c0_12] : memref<8x128xf32, #tpu.memory_space<vmem>>, vector<8x128xf32>
    tpu.vector_store %arg5[%c0_11, %c0_12], %19 {strides = array<i32>} : memref<8x128xf32, #tpu.memory_space<vmem>>, vector<8x128xf32>,
    return
  }
  func.func @transform_0(%arg0: i32) -> (i32, i32) {
    %c0_i32 = arith.constant 0 : i32
    %c0_i32_0 = arith.constant 0 : i32
    return %arg0, %c0_i32 : i32, i32
  }
  func.func @transform_1(%arg0: i32) -> (i32, i32) {
    %c0_i32 = arith.constant 0 : i32
    %c0_i32_0 = arith.constant 0 : i32
    return %arg0, %c0_i32 : i32, i32
  }
  func.func @transform_2(%arg0: i32) -> (i32, i32) {
    %c0_i32 = arith.constant 0 : i32
    %c0_i32_0 = arith.constant 0 : i32
    return %arg0, %c0_i32 : i32, i32
  }
  func.func @transform_3(%arg0: i32) -> (i32, i32) {
    %c0_i32 = arith.constant 0 : i32
    %c0_i32_0 = arith.constant 0 : i32
    return %arg0, %c0_i32 : i32, i32
  }
  func.func @transform_4(%arg0: i32) -> (i32, i32) {
    %c0_i32 = arith.constant 0 : i32
    %c0_i32_0 = arith.constant 0 : i32
    return %arg0, %c0_i32 : i32, i32
  }
}

</mosaic_0001>

<llo_original>
// kernel: tpu_custom_call.1
$region0: #{tpu_custom_call.1}
  #allocation0 [shape = 'u32[]', space=smem, size = 0x4, offset = 0x4, fixed_abs, tag = 'smem constant byte address 0x4 - core index']
  #allocation1 [shape = 'u32[72,128]{1,0:T(1,128)}', space=vmem, size = 0x9000, scoped, tag = 'internal scratch']
  %s0 = inlined_call_operand.hbm [shape: f32[8,128], index: 0, kind: input, shape index: {}]
  %s1 = inlined_call_operand.hbm [shape: f32[8,128], index: 1, kind: input, shape index: {}]
  %s2 = inlined_call_operand.hbm [shape: f32[8,128], index: 2, kind: input, shape index: {}]
  %s3 = inlined_call_operand.hbm [shape: f32[8,128], index: 3, kind: input, shape index: {}]
  %s4 = inlined_call_operand.hbm [shape: f32[8,128], index: 4, kind: output, shape index: {}]
  %s5 = sld [smem:[#allocation0]]
  $region42: #{tpu_custom_call.1} parent=0
    _
  %s7 = ssub.s32 1, %s5
  %s8 = scalar_select 0, %s7, %s5
  $region1: #{tpu_custom_call.1} parent=0
    #allocation2 [shape = 'u8[4096]{0}', space=vmem, size = 0x1000, scoped, tag = 'input window, operand 0, single buffered']
    #allocation3 [shape = 's32[1]{0}', space=sflag, size = 0x4, scoped, tag = 'scoped memory for tpu_custom_call.1']
    #allocation4 [shape = 's32[1]{0}', space=sflag, size = 0x4, scoped, tag = 'scoped memory for tpu_custom_call.1']
    #allocation5 [shape = 'u8[4096]{0}', space=vmem, size = 0x1000, scoped, tag = 'input window, operand 1, single buffered']
    #allocation6 [shape = 's32[1]{0}', space=sflag, size = 0x4, scoped, tag = 'scoped memory for tpu_custom_call.1']
    #allocation7 [shape = 'u8[4096]{0}', space=vmem, size = 0x1000, scoped, tag = 'input window, operand 2, single buffered']
    #allocation8 [shape = 'u8[4096]{0}', space=vmem, size = 0x1000, scoped, tag = 'input window, operand 3, single buffered']
    #allocation9 [shape = 's32[1]{0}', space=sflag, size = 0x4, scoped, tag = 'scoped memory for tpu_custom_call.1']
    #allocation10 [shape = 'u8[4096]{0}', space=vmem, size = 0x1000, scoped, tag = 'output window, operand 0, single buffered']
    %9 = vsyncpa [#allocation3], 0
    %10 = vsyncpa [#allocation6], 0
    %11 = vsyncpa [#allocation9], 0
    %12 = vsyncpa [#allocation4], 0
    // Predicated region
    $region2: #{tpu_custom_call.1} parent=1 // pred_check
      _
    $region3: #{tpu_custom_call.1} parent=1 // pred_check_branch
      %14 = sbr.rel (0) target = $region5
    $region4: #{tpu_custom_call.1} parent=1 // pred_region
      %16 = vsyncadd [#allocation3], 0
      %s18 = sshll.u32 %s0, 4
      %s19 = int_to_ptr.hbm [resolvable:$true] %s18
      %s20 = sshll.u32 [#allocation2], 4
      %s21 = int_to_ptr.vmem [resolvable:$true] %s20
      %23 = dma.hbm_to_vmem [thread:$0]  %s19, 128, %s21, [#allocation3]
    $region5: #{tpu_custom_call.1} parent=1 // pred_fallthru
      _
    // Predicated region
    $region6: #{tpu_custom_call.1} parent=1 // pred_check
      _
    $region7: #{tpu_custom_call.1} parent=1 // pred_check_branch
      %25 = sbr.rel (0) target = $region9
    $region8: #{tpu_custom_call.1} parent=1 // pred_region
      %27 = vsyncadd [#allocation6], 0
      %s29 = sshll.u32 %s1, 4
      %s30 = int_to_ptr.hbm [resolvable:$true] %s29
      %s31 = sshll.u32 [#allocation5], 4
      %s32 = int_to_ptr.vmem [resolvable:$true] %s31
      %34 = dma.hbm_to_vmem [thread:$0]  %s30, 128, %s32, [#allocation6]
    $region9: #{tpu_custom_call.1} parent=1 // pred_fallthru
      _
    // Predicated region
    $region10: #{tpu_custom_call.1} parent=1 // pred_check
      _
    $region11: #{tpu_custom_call.1} parent=1 // pred_check_branch
      %36 = sbr.rel (0) target = $region13
    $region12: #{tpu_custom_call.1} parent=1 // pred_region
      %38 = vsyncadd [#allocation6], 0
      %s40 = sshll.u32 %s2, 4
      %s41 = int_to_ptr.hbm [resolvable:$true] %s40
      %s42 = sshll.u32 [#allocation7], 4
      %s43 = int_to_ptr.vmem [resolvable:$true] %s42
      %45 = dma.hbm_to_vmem [thread:$0]  %s41, 128, %s43, [#allocation6]
    $region13: #{tpu_custom_call.1} parent=1 // pred_fallthru
      _
    // Predicated region
    $region14: #{tpu_custom_call.1} parent=1 // pred_check
      _
    $region15: #{tpu_custom_call.1} parent=1 // pred_check_branch
      %47 = sbr.rel (0) target = $region17
    $region16: #{tpu_custom_call.1} parent=1 // pred_region
      %49 = vsyncadd [#allocation9], 0
      %s51 = sshll.u32 %s3, 4
      %s52 = int_to_ptr.hbm [resolvable:$true] %s51
      %s53 = sshll.u32 [#allocation8], 4
      %s54 = int_to_ptr.vmem [resolvable:$true] %s53
      %56 = dma.hbm_to_vmem [thread:$0]  %s52, 128, %s54, [#allocation9]
    $region17: #{tpu_custom_call.1} parent=1 // pred_fallthru
      _
    // Predicated region
    $region18: #{tpu_custom_call.1} parent=1 // pred_check
      _
    $region19: #{tpu_custom_call.1} parent=1 // pred_check_branch
      %58 = sbr.rel (0) target = $region21
    $region20: #{tpu_custom_call.1} parent=1 // pred_region
      %60 = dma.done [#allocation3], 128
    $region21: #{tpu_custom_call.1} parent=1 // pred_fallthru
      _
    // Predicated region
    $region22: #{tpu_custom_call.1} parent=1 // pred_check
      _
    $region23: #{tpu_custom_call.1} parent=1 // pred_check_branch
      %62 = sbr.rel (0) target = $region25
    $region24: #{tpu_custom_call.1} parent=1 // pred_region
      %64 = dma.done [#allocation6], 128
    $region25: #{tpu_custom_call.1} parent=1 // pred_fallthru
      _
    // Predicated region
    $region26: #{tpu_custom_call.1} parent=1 // pred_check
      _
    $region27: #{tpu_custom_call.1} parent=1 // pred_check_branch
      %66 = sbr.rel (0) target = $region29
    $region28: #{tpu_custom_call.1} parent=1 // pred_region
      %68 = dma.done [#allocation6], 128
    $region29: #{tpu_custom_call.1} parent=1 // pred_fallthru
      _
    // Predicated region
    $region30: #{tpu_custom_call.1} parent=1 // pred_check
      _
    $region31: #{tpu_custom_call.1} parent=1 // pred_check_branch
      %70 = sbr.rel (0) target = $region33
    $region32: #{tpu_custom_call.1} parent=1 // pred_region
      %72 = dma.done [#allocation9], 128
    $region33: #{tpu_custom_call.1} parent=1 // pred_fallthru
      _
    %v73 = vld [vmem:[#allocation2] sm:$0xff]
    %v74 = vld [vmem:[#allocation5] sm:$0xff]
    %v75 = vld [vmem:[#allocation7] sm:$0xff]
    %v76 = vld [vmem:[#allocation8] sm:$0xff]
    %v77 = vsub.f32 %v73, %v74
    %v78 = vmax.f32 %v77, 0.0
    %v79 = vmax.f32 %v74, 0.0
    %v80 = vadd.f32 %v78, %v79
    %v81 = vsub.f32 %v75, %v76
    %v82 = vmax.f32 %v81, 0.0
    %v83 = vmax.f32 %v76, 0.0
    %v84 = vadd.f32 %v82, %v83
    %v85 = vsub.f32 %v80, %v84
    %v86 = vmax.f32 %v85, 0.0
    %v87 = vadd.f32 %v86, %v84
    %88 = vst [vmem:[#allocation10] sm:$0xff] %v87
    // Predicated region
    $region34: #{tpu_custom_call.1} parent=1 // pred_check
      _
    $region35: #{tpu_custom_call.1} parent=1 // pred_check_branch
      %90 = sbr.rel (0) target = $region37
    $region36: #{tpu_custom_call.1} parent=1 // pred_region
      %92 = vsyncadd [#allocation4], 0
      %s94 = sshll.u32 [#allocation10], 4
      %s95 = int_to_ptr.vmem [resolvable:$true] %s94
      %s96 = sshll.u32 %s4, 4
      %s97 = int_to_ptr.hbm [resolvable:$true] %s96
      %99 = dma.vmem_to_hbm [thread:$0]  %s95, 128, %s97, [#allocation4]
    $region37: #{tpu_custom_call.1} parent=1 // pred_fallthru
      _
    // Predicated region
    $region38: #{tpu_custom_call.1} parent=1 // pred_check
      _
    $region39: #{tpu_custom_call.1} parent=1 // pred_check_branch
      %101 = sbr.rel (0) target = $region41
    $region40: #{tpu_custom_call.1} parent=1 // pred_region
      %103 = dma.done [#allocation4], 128
    $region41: #{tpu_custom_call.1} parent=1 // pred_fallthru
      _
    %104 = vsyncpa [#allocation3], 1
    %105 = vsyncpa [#allocation6], 1
    %106 = vsyncpa [#allocation9], 1
    %107 = vsyncpa [#allocation4], 1

</llo_original>
